<compile_context>
chip_gen: v7x
topology: tpu7x:2x2x1
jax: 0.10.0
libtpu: 0.0.40
codegen_flags: <defaults>
</compile_context>

<pallas_src>
import jax
import jax.numpy as jnp
from jax.experimental import pallas as pl
from jax.experimental.pallas import tpu as pltpu

HIDDEN1 = 256
HIDDEN2 = 64


def mlp_kernel(x_ref, w1_ref, b1_ref, w2_ref, b2_ref, w3_ref, b3_ref, o_ref):
    # All three layers fused; intermediates stay in vregs/VMEM.
    # fc1/fc2 run in bf16 on the MXU with f32 accumulation; bias+ReLU in f32.
    x = x_ref[...]                                                # (tm, D) bf16
    h1 = jnp.dot(x, w1_ref[...], preferred_element_type=jnp.float32)
    h1 = jnp.maximum(h1 + b1_ref[...], 0.0)                       # (tm, 256) f32
    # dropout1: identity (inference)
    h2 = jnp.dot(h1.astype(jnp.bfloat16), w2_ref[...],
                 preferred_element_type=jnp.float32)
    h2 = jnp.maximum(h2 + b2_ref[...], 0.0)                       # (tm, 64) f32
    # dropout2: identity (inference)
    # fc3 (64 -> 1) on the VPU/XLU: broadcast-multiply by the single weight
    # column then reduce over the lane axis.  Avoids a zero-padded MXU matmul
    # and lets the output be a narrow (tm, 1) store.
    out = jnp.sum(h2 * w3_ref[...], axis=-1, keepdims=True) + b3_ref[...]
    o_ref[...] = out.astype(o_ref.dtype)                          # (tm, 1) f32


def prepare_params(params):
    """Cast matmul weights to bf16; keep biases and the fc3 row in f32."""
    w1, b1, w2, b2, w3, b3 = params
    return (
        w1.astype(jnp.bfloat16),
        b1.astype(jnp.float32).reshape(1, HIDDEN1),
        w2.astype(jnp.bfloat16),
        b2.astype(jnp.float32).reshape(1, HIDDEN2),
        w3.astype(jnp.float32).reshape(HIDDEN2, 1).T,   # (1, 64) row for VPU fc3
        b3.astype(jnp.float32).reshape(1, 1),
    )


def mlp_forward(x, prepared_params, *, block_m=1024):
    w1, b1, w2, b2, w3r, b3 = prepared_params
    B, D = x.shape

    # Cap the tile so VMEM (f32 h1 intermediate + bf16 copies + double-buffered
    # x/out) stays comfortably under v5e's 16 MiB scoped-VMEM default.
    block_m = min(block_m, 2048)

    # Tile the batch with minimal tail padding:
    #   n_steps = ceil(B / block_m);  tm = round_up(ceil(B / n_steps), 8)
    n_steps = pl.cdiv(B, block_m)
    tm = pl.cdiv(pl.cdiv(B, n_steps), 8) * 8
    Bp = n_steps * tm

    # Feed activations as bf16 (fc1 consumes bf16 anyway) -> half the DMA bytes.
    x = x.astype(jnp.bfloat16)
    if Bp != B:
        x = jnp.pad(x, ((0, Bp - B), (0, 0)))

    const = lambda shape: pl.BlockSpec(shape, lambda i: (0,) * len(shape))

    flops = 2 * Bp * (D * HIDDEN1 + HIDDEN1 * HIDDEN2 + HIDDEN2)
    bytes_accessed = (
        Bp * D * 2                      # x (bf16)
        + w1.size * 2 + w2.size * 2     # bf16 weights
        + (b1.size + b2.size + w3r.size + b3.size) * 4
        + Bp * 4                        # (Bp, 1) f32 output
    )

    out = pl.pallas_call(
        mlp_kernel,
        out_shape=jax.ShapeDtypeStruct((Bp, 1), jnp.float32),
        grid=(n_steps,),
        in_specs=[
            pl.BlockSpec((tm, D), lambda i: (i, 0)),   # x: tiled over batch
            const(w1.shape), const(b1.shape),          # weights: VMEM-resident
            const(w2.shape), const(b2.shape),
            const(w3r.shape), const(b3.shape),
        ],
        out_specs=pl.BlockSpec((tm, 1), lambda i: (i, 0)),
        compiler_params=pltpu.CompilerParams(
            # On v7x, switch to pltpu.CORE_PARALLEL if xprof shows one TC idle.
            dimension_semantics=("parallel",),
        ),
        cost_estimate=pl.CostEstimate(
            flops=flops, transcendentals=0, bytes_accessed=bytes_accessed),
    )(x, w1, b1, w2, b2, w3r, b3)

    return out[:B]   # slice away batch padding; output is already (B, 1)


def init_params(key, input_size):
    # Deterministic synthetic parameters (shapes match the nn.Linear layers,
    # stored transposed: (in, out) instead of PyTorch's (out, in)).
    ks = jax.random.split(key, 6)
    w1 = jax.random.normal(ks[0], (input_size, HIDDEN1), jnp.float32) * 0.05
    b1 = jax.random.normal(ks[1], (1, HIDDEN1), jnp.float32) * 0.05
    w2 = jax.random.normal(ks[2], (HIDDEN1, HIDDEN2), jnp.float32) * 0.05
    b2 = jax.random.normal(ks[3], (1, HIDDEN2), jnp.float32) * 0.05
    w3 = jax.random.normal(ks[4], (HIDDEN2, 1), jnp.float32) * 0.05
    b3 = jax.random.normal(ks[5], (1, 1), jnp.float32) * 0.05
    return (w1, b1, w2, b2, w3, b3)


def reference_forward(x, params):
    """Pure-JAX reference matching the kernel's math (bf16 fc1/fc2, f32 fc3)."""
    w1, b1, w2, b2, w3, b3 = params
    xb = x.astype(jnp.bfloat16)
    h1 = jnp.dot(xb, w1.astype(jnp.bfloat16),
                 preferred_element_type=jnp.float32) + b1
    h1 = jnp.maximum(h1, 0.0)
    h2 = jnp.dot(h1.astype(jnp.bfloat16), w2.astype(jnp.bfloat16),
                 preferred_element_type=jnp.float32) + b2
    h2 = jnp.maximum(h2, 0.0)
    return jnp.dot(h2, w3) + b3


if __name__ == "__main__":
    key = jax.random.PRNGKey(0)
    k_x, k_x2, k_p = jax.random.split(key, 3)

    input_size = 32
    params = init_params(k_p, input_size)
    prepared = prepare_params(params)

    # Small batch (single grid step, tm clamps to 8).
    x_small = jax.random.normal(k_x, (8, input_size), jnp.float32)
    out_small = jax.block_until_ready(mlp_forward(x_small, prepared))
    ref_small = reference_forward(x_small, params)
    assert out_small.shape == (8, 1), out_small.shape
    assert jnp.allclose(out_small, ref_small, atol=1e-2, rtol=1e-2), \
        "mismatch vs reference (small batch)"

    # Non-tile-multiple batch with a small block_m to exercise the multi-step
    # grid + minimal-tail-padding path (260 rows -> 3 steps of 88 rows).
    x_big = jax.random.normal(k_x2, (260, input_size), jnp.float32)
    out_big = jax.block_until_ready(mlp_forward(x_big, prepared, block_m=128))
    ref_big = reference_forward(x_big, params)
    assert out_big.shape == (260, 1), out_big.shape
    assert jnp.allclose(out_big, ref_big, atol=1e-2, rtol=1e-2), \
        "mismatch vs reference (multi-step batch)"

    # Default (large-tile) path on the same data.
    out_big2 = jax.block_until_ready(mlp_forward(x_big, prepared))
    assert jnp.allclose(out_big2, ref_big, atol=1e-2, rtol=1e-2), \
        "mismatch vs reference (default tile)"

    print("KERNEL_OK")
</pallas_src>

<mosaic_0001>
module attributes {stable_mosaic.version = 11 : i64} {
  func.func @mlp_kernel(%arg0: i32, %arg1: memref<8x32xbf16, #tpu.memory_space<vmem>>, %arg2: memref<32x256xbf16, #tpu.memory_space<vmem>>, %arg3: memref<1x256xf32, #tpu.memory_space<vmem>>, %arg4: memref<256x64xbf16, #tpu.memory_space<vmem>>, %arg5: memref<1x64xf32, #tpu.memory_space<vmem>>, %arg6: memref<1x64xf32, #tpu.memory_space<vmem>>, %arg7: memref<1x1xf32, #tpu.memory_space<vmem>>, %arg8: memref<8x1xf32, #tpu.memory_space<vmem>>) attributes {dimension_semantics = [#tpu.dimension_semantics<parallel>], iteration_bounds = array<i64: 1>, scalar_prefetch = 0 : i64, scratch_operands = 0 : i64, tpu.core_type = #tpu.core_type<tc>, window_params = [{transform_indices = @transform_0, window_bounds = array<i64: 8, 32>}, {pipeline_mode = #tpu.pipeline_mode<synchronous>, transform_indices = @transform_1, window_bounds = array<i64: 32, 256>}, {pipeline_mode = #tpu.pipeline_mode<synchronous>, transform_indices = @transform_2, window_bounds = array<i64: 1, 256>}, {pipeline_mode = #tpu.pipeline_mode<synchronous>, transform_indices = @transform_3, window_bounds = array<i64: 256, 64>}, {pipeline_mode = #tpu.pipeline_mode<synchronous>, transform_indices = @transform_4, window_bounds = array<i64: 1, 64>}, {pipeline_mode = #tpu.pipeline_mode<synchronous>, transform_indices = @transform_5, window_bounds = array<i64: 1, 64>}, {pipeline_mode = #tpu.pipeline_mode<synchronous>, transform_indices = @transform_6, window_bounds = array<i64: 1, 1>}, {transform_indices = @transform_7, window_bounds = array<i64: 8, 1>}]} {
    %c0 = arith.constant 0 : index
    %c0_0 = arith.constant 0 : index
    %0 = vector.load %arg1[%c0, %c0_0] : memref<8x32xbf16, #tpu.memory_space<vmem>>, vector<8x32xbf16>
    %c0_1 = arith.constant 0 : index
    %c0_2 = arith.constant 0 : index
    %1 = vector.load %arg2[%c0_1, %c0_2] : memref<32x256xbf16, #tpu.memory_space<vmem>>, vector<32x256xbf16>
    %cst = arith.constant dense<0.000000e+00> : vector<8x256xf32>
    %2 = tpu.matmul %0, %1, %cst {dimension_numbers = #tpu.dot_dimension_numbers<[1], [0], [0], [1], [0, 0, 1, 1], [], []>} : vector<8x32xbf16>, vector<32x256xbf16>, vector<8x256xf32> -> vector<8x256xf32>
    %c0_3 = arith.constant 0 : index
    %c0_4 = arith.constant 0 : index
    %3 = vector.load %arg3[%c0_3, %c0_4] : memref<1x256xf32, #tpu.memory_space<vmem>>, vector<1x256xf32>
    %4 = vector.broadcast %3 : vector<1x256xf32> to vector<8x256xf32>
    %5 = arith.addf %2, %4 : vector<8x256xf32>
    %cst_5 = arith.constant 0.000000e+00 : f32
    %6 = vector.broadcast %cst_5 : f32 to vector<8x256xf32>
    %7 = arith.maximumf %5, %6 : vector<8x256xf32>
    %8 = arith.truncf %7 : vector<8x256xf32> to vector<8x256xbf16>
    %c0_6 = arith.constant 0 : index
    %c0_7 = arith.constant 0 : index
    %9 = vector.load %arg4[%c0_6, %c0_7] : memref<256x64xbf16, #tpu.memory_space<vmem>>, vector<256x64xbf16>
    %cst_8 = arith.constant dense<0.000000e+00> : vector<8x64xf32>
    %10 = tpu.matmul %8, %9, %cst_8 {dimension_numbers = #tpu.dot_dimension_numbers<[1], [0], [0], [1], [0, 0, 1, 1], [], []>} : vector<8x256xbf16>, vector<256x64xbf16>, vector<8x64xf32> -> vector<8x64xf32>
    %c0_9 = arith.constant 0 : index
    %c0_10 = arith.constant 0 : index
    %11 = vector.load %arg5[%c0_9, %c0_10] : memref<1x64xf32, #tpu.memory_space<vmem>>, vector<1x64xf32>
    %12 = vector.broadcast %11 : vector<1x64xf32> to vector<8x64xf32>
    %13 = arith.addf %10, %12 : vector<8x64xf32>
    %cst_11 = arith.constant 0.000000e+00 : f32
    %14 = vector.broadcast %cst_11 : f32 to vector<8x64xf32>
    %15 = arith.maximumf %13, %14 : vector<8x64xf32>
    %c0_12 = arith.constant 0 : index
    %c0_13 = arith.constant 0 : index
    %16 = vector.load %arg6[%c0_12, %c0_13] : memref<1x64xf32, #tpu.memory_space<vmem>>, vector<1x64xf32>
    %17 = vector.broadcast %16 : vector<1x64xf32> to vector<8x64xf32>
    %18 = arith.mulf %15, %17 : vector<8x64xf32>
    %cst_14 = arith.constant dense<0.000000e+00> : vector<8xf32>
    %19 = vector.multi_reduction <add>, %18, %cst_14 [1] : vector<8x64xf32> to vector<8xf32>
    %20 = vector.shape_cast %19 : vector<8xf32> to vector<8x1xf32>
    %c0_15 = arith.constant 0 : index
    %c0_16 = arith.constant 0 : index
    %21 = vector.load %arg7[%c0_15, %c0_16] : memref<1x1xf32, #tpu.memory_space<vmem>>, vector<1x1xf32>
    %22 = vector.broadcast %21 : vector<1x1xf32> to vector<8x1xf32>
    %23 = arith.addf %20, %22 : vector<8x1xf32>
    %c0_17 = arith.constant 0 : index
    %c0_18 = arith.constant 0 : index
    %24 = vector.load %arg8[%c0_17, %c0_18] : memref<8x1xf32, #tpu.memory_space<vmem>>, vector<8x1xf32>
    tpu.vector_store %arg8[%c0_17, %c0_18], %23 {strides = array<i32>} : memref<8x1xf32, #tpu.memory_space<vmem>>, vector<8x1xf32>,
    return
  }
  func.func @transform_0(%arg0: i32) -> (i32, i32) {
    %c0_i32 = arith.constant 0 : i32
    %c0_i32_0 = arith.constant 0 : i32
    return %arg0, %c0_i32 : i32, i32
  }
  func.func @transform_1(%arg0: i32) -> (i32, i32) {
    %c0_i32 = arith.constant 0 : i32
    %c0_i32_0 = arith.constant 0 : i32
    %c0_i32_1 = arith.constant 0 : i32
    return %c0_i32, %c0_i32_0 : i32, i32
  }
  func.func @transform_2(%arg0: i32) -> (i32, i32) {
    %c0_i32 = arith.constant 0 : i32
    %c0_i32_0 = arith.constant 0 : i32
    %c0_i32_1 = arith.constant 0 : i32
    return %c0_i32, %c0_i32_0 : i32, i32
  }
  func.func @transform_3(%arg0: i32) -> (i32, i32) {
    %c0_i32 = arith.constant 0 : i32
    %c0_i32_0 = arith.constant 0 : i32
    %c0_i32_1 = arith.constant 0 : i32
    return %c0_i32, %c0_i32_0 : i32, i32
  }
  func.func @transform_4(%arg0: i32) -> (i32, i32) {
    %c0_i32 = arith.constant 0 : i32
    %c0_i32_0 = arith.constant 0 : i32
    %c0_i32_1 = arith.constant 0 : i32
    return %c0_i32, %c0_i32_0 : i32, i32
  }
  func.func @transform_5(%arg0: i32) -> (i32, i32) {
    %c0_i32 = arith.constant 0 : i32
    %c0_i32_0 = arith.constant 0 : i32
    %c0_i32_1 = arith.constant 0 : i32
    return %c0_i32, %c0_i32_0 : i32, i32
  }
  func.func @transform_6(%arg0: i32) -> (i32, i32) {
    %c0_i32 = arith.constant 0 : i32
    %c0_i32_0 = arith.constant 0 : i32
    %c0_i32_1 = arith.constant 0 : i32
    return %c0_i32, %c0_i32_0 : i32, i32
  }
  func.func @transform_7(%arg0: i32) -> (i32, i32) {
    %c0_i32 = arith.constant 0 : i32
    %c0_i32_0 = arith.constant 0 : i32
    return %arg0, %c0_i32 : i32, i32
  }
}

</mosaic_0001>

<llo_original>
// kernel: tpu_custom_call.1
$region0: #{tpu_custom_call.1}
  #allocation0 [shape = 'u32[]', space=smem, size = 0x4, offset = 0x4, fixed_abs, tag = 'smem constant byte address 0x4 - core index']
  #allocation1 [shape = 'u32[144,128]{1,0:T(1,128)}', space=vmem, size = 0x12000, scoped, tag = 'internal scratch']
  #allocation2 [shape = 'f32[1,1]{1,0:T(1,128)S(1)}', space=vmem, size = 0x200, scoped, tag = 'scoped memory for tpu_custom_call.1']
  %s0 = inlined_call_operand.vmem [shape: bf16[8,32], index: 0, kind: input, shape index: {}]
  %s1 = inlined_call_operand.vmem [shape: bf16[32,256], index: 1, kind: input, shape index: {}]
  %s2 = inlined_call_operand.vmem [shape: f32[1,256], index: 2, kind: input, shape index: {}]
  %s3 = inlined_call_operand.vmem [shape: bf16[256,64], index: 3, kind: input, shape index: {}]
  %s4 = inlined_call_operand.vmem [shape: f32[1,64], index: 4, kind: input, shape index: {}]
  %s5 = inlined_call_operand.vmem [shape: f32[1,64], index: 5, kind: input, shape index: {}]
  %s6 = inlined_call_operand.<no memory space> [shape: f32[1,1], index: 6, kind: input, shape index: {}]
  %s7 = inlined_call_operand.vmem [shape: f32[8,1], index: 7, kind: output, shape index: {}]
  %s8 = sld [smem:[#allocation0]]
  $region38: #{tpu_custom_call.1} parent=0
    _
  %s10 = ssub.s32 1, %s8
  %s11 = scalar_select 0, %s10, %s8
  %v12 = vstv %s6
  %13 = vst [vmem:[#allocation2] sm:$0x1] %v12
  // Predicated region
  $region2: #{tpu_custom_call.1} parent=0 // pred_check
    _
  $region3: #{tpu_custom_call.1} parent=0 // pred_check_branch
    %15 = sbr.rel (0) target = $region5
  $region4: #{tpu_custom_call.1} parent=0 // pred_region
    _
  $region5: #{tpu_custom_call.1} parent=0 // pred_fallthru
    _
  // Predicated region
  $region6: #{tpu_custom_call.1} parent=0 // pred_check
    _
  $region7: #{tpu_custom_call.1} parent=0 // pred_check_branch
    %17 = sbr.rel (0) target = $region9
  $region8: #{tpu_custom_call.1} parent=0 // pred_region
    _
  $region9: #{tpu_custom_call.1} parent=0 // pred_fallthru
    _
  // Predicated region
  $region10: #{tpu_custom_call.1} parent=0 // pred_check
    _
  $region11: #{tpu_custom_call.1} parent=0 // pred_check_branch
    %19 = sbr.rel (0) target = $region13
  $region12: #{tpu_custom_call.1} parent=0 // pred_region
    _
  $region13: #{tpu_custom_call.1} parent=0 // pred_fallthru
    _
  // Predicated region
  $region14: #{tpu_custom_call.1} parent=0 // pred_check
    _
  $region15: #{tpu_custom_call.1} parent=0 // pred_check_branch
    %21 = sbr.rel (0) target = $region17
  $region16: #{tpu_custom_call.1} parent=0 // pred_region
    _
  $region17: #{tpu_custom_call.1} parent=0 // pred_fallthru
    _
  // Predicated region
  $region18: #{tpu_custom_call.1} parent=0 // pred_check
    _
  $region19: #{tpu_custom_call.1} parent=0 // pred_check_branch
    %23 = sbr.rel (0) target = $region21
  $region20: #{tpu_custom_call.1} parent=0 // pred_region
    _
  $region21: #{tpu_custom_call.1} parent=0 // pred_fallthru
    _
  // Predicated region
  $region22: #{tpu_custom_call.1} parent=0 // pred_check
    _
  $region23: #{tpu_custom_call.1} parent=0 // pred_check_branch
    %25 = sbr.rel (0) target = $region25
  $region24: #{tpu_custom_call.1} parent=0 // pred_region
    _
  $region25: #{tpu_custom_call.1} parent=0 // pred_fallthru
    _
  // Predicated region
  $region26: #{tpu_custom_call.1} parent=0 // pred_check
    _
  $region27: #{tpu_custom_call.1} parent=0 // pred_check_branch
    %27 = sbr.rel (0) target = $region29
  $region28: #{tpu_custom_call.1} parent=0 // pred_region
    _
  $region29: #{tpu_custom_call.1} parent=0 // pred_fallthru
    _
  %v29 = vld [vmem:[%s0] sm:$0xf]
  %v30 = vld [vmem:[%s1] sm:$0xff]
  %v31 = vld [vmem:[%s1 + $0x8] sm:$0xff]
  %v32 = vld [vmem:[%s1 + $0x10] sm:$0xff]
  %v33 = vld [vmem:[%s1 + $0x18] sm:$0xff]
  %v34 = vld [vmem:[%s2] sm:$0x3]
  %v36 = vlaneseq
  %v37 = vshrl.u32 %v36, 7
  %v38 = vsub.s32 0, %v37
  %v39 = vrot.slane %v34, %v38
  %v40 = vlaneseq
  %v41 = vshrl.u32 %v40, 7
  %v42 = vsub.s32 1, %v41
  %v43 = vrot.slane %v34, %v42
  %v50 = vunpack.c.l.b16 %v30
  %v51 = vunpack.c.h.b16 %v30
  %v52 = vunpack.c.l.b16 %v31
  %v53 = vunpack.c.h.b16 %v31
  %v54 = vunpack.c.l.b16 %v32
  %v55 = vunpack.c.h.b16 %v32
  %v56 = vunpack.c.l.b16 %v33
  %v57 = vunpack.c.h.b16 %v33
  %v58 = vpack.c.b16 %v52, %v50
  %v59 = vpack.c.b16 %v53, %v51
  %v60 = vpack.c.b16 %v56, %v54
  %v61 = vpack.c.b16 %v57, %v55
  %vm66 = vcmask 261120
  %v68 = vsel %vm66, %v29, 0
  %70 = vmatprep.subr.bf16.mxu0 %v59
  %71 = vmatpush1.bf16.msra.mxu0 %v58
  %72 = vmatprep.subr.bf16.mxu0 %v61
  %73 = vmatpush1.bf16.msra.mxu0 %v60
  %74 = vmatprep.subr.bf16.mxu0 0
  %75 = vmatpush1.bf16.msra.mxu0 0
  %76 = vmatprep.subr.bf16.mxu0 0
  %77 = vmatpush1.bf16.msra.mxu0 0
  %78 = vmatprep.subr.bf16.mxu0 0
  %79 = vmatpush1.bf16.msra.mxu0 0
  %80 = vmatprep.subr.bf16.mxu0 0
  %81 = vmatpush1.bf16.msra.mxu0 0
  %82 = vmatprep.subr.bf16.mxu0 0
  %83 = vmatpush1.bf16.msra.mxu0 0
  %84 = vmatprep.subr.bf16.mxu0 0
  %85 = vmatpush1.bf16.msra.mxu0 0
  %86 = vmatprep.subr.bf16.mxu0 0
  %87 = vmatpush1.bf16.msra.mxu0 0
  %88 = vmatprep.subr.bf16.mxu0 0
  %89 = vmatpush1.bf16.msra.mxu0 0
  %90 = vmatprep.subr.bf16.mxu0 0
  %91 = vmatpush1.bf16.msra.mxu0 0
  %92 = vmatprep.subr.bf16.mxu0 0
  %93 = vmatpush1.bf16.msra.mxu0 0
  %94 = vmatprep.subr.bf16.mxu0 0
  %95 = vmatpush1.bf16.msra.mxu0 0
  %96 = vmatprep.subr.bf16.mxu0 0
  %97 = vmatpush1.bf16.msra.mxu0 0
  %98 = vmatprep.subr.bf16.mxu0 0
  %99 = vmatpush1.bf16.msra.mxu0 0
  %100 = vmatprep.subr.bf16.mxu0 0
  %101 = vmatpush1.bf16.msra.mxu0 0
  %102 = vmatprep.mubr.bf16.mxu0 0
  %103 = vmatmul.mubr.bf16.gmra.mrb[0].mxu0 %v68
  %v104 = vpop.f32.mrb[0].mxu0
  %v105 = vadd.f32 %v39, %v104
  %v106 = vpop.f32.mrb[0].mxu0
  %v107 = vadd.f32 %v43, %v106
  %v108 = vpop.f32.mrb[0].mxu0
  %v109 = vpop.f32.mrb[0].mxu0
  %110 = vdwg.mxu0
  %v111 = vmax.f32 %v105, 0.0
  %v112 = vmax.f32 %v107, 0.0
  %v113 = vpack.c.bf16 %v111, %v111
  %v114 = vpack.c.bf16 %v112, %v112
  %v115 = vld [vmem:[%s3] sm:$0xf]
  %v116 = vld [vmem:[%s3 + $0x4] sm:$0xf]
  %v117 = vld [vmem:[%s3 + $0x8] sm:$0xf]
  %v118 = vld [vmem:[%s3 + $0xc] sm:$0xf]
  %v119 = vld [vmem:[%s3 + $0x10] sm:$0xf]
  %v120 = vld [vmem:[%s3 + $0x14] sm:$0xf]
  %v121 = vld [vmem:[%s3 + $0x18] sm:$0xf]
  %v122 = vld [vmem:[%s3 + $0x1c] sm:$0xf]
  %v123 = vld [vmem:[%s3 + $0x20] sm:$0xf]
  %v124 = vld [vmem:[%s3 + $0x24] sm:$0xf]
  %v125 = vld [vmem:[%s3 + $0x28] sm:$0xf]
  %v126 = vld [vmem:[%s3 + $0x2c] sm:$0xf]
  %v127 = vld [vmem:[%s3 + $0x30] sm:$0xf]
  %v128 = vld [vmem:[%s3 + $0x34] sm:$0xf]
  %v129 = vld [vmem:[%s3 + $0x38] sm:$0xf]
  %v130 = vld [vmem:[%s3 + $0x3c] sm:$0xf]
  %v131 = vld [vmem:[%s3 + $0x40] sm:$0xf]
  %v132 = vld [vmem:[%s3 + $0x44] sm:$0xf]
  %v133 = vld [vmem:[%s3 + $0x48] sm:$0xf]
  %v134 = vld [vmem:[%s3 + $0x4c] sm:$0xf]
  %v135 = vld [vmem:[%s3 + $0x50] sm:$0xf]
  %v136 = vld [vmem:[%s3 + $0x54] sm:$0xf]
  %v137 = vld [vmem:[%s3 + $0x58] sm:$0xf]
  %v138 = vld [vmem:[%s3 + $0x5c] sm:$0xf]
  %v139 = vld [vmem:[%s3 + $0x60] sm:$0xf]
  %v140 = vld [vmem:[%s3 + $0x64] sm:$0xf]
  %v141 = vld [vmem:[%s3 + $0x68] sm:$0xf]
  %v142 = vld [vmem:[%s3 + $0x6c] sm:$0xf]
  %v143 = vld [vmem:[%s3 + $0x70] sm:$0xf]
  %v144 = vld [vmem:[%s3 + $0x74] sm:$0xf]
  %v145 = vld [vmem:[%s3 + $0x78] sm:$0xf]
  %v146 = vld [vmem:[%s3 + $0x7c] sm:$0xf]
  %v147 = vld [vmem:[%s4] sm:$0x1]
  %v149 = vlaneseq
  %v150 = vshrl.u32 %v149, 7
  %v151 = vsub.s32 0, %v150
  %v152 = vrot.slane %v147, %v151
  %v186 = vunpack.c.l.b16 %v115
  %v187 = vunpack.c.l.b16 %v116
  %v188 = vunpack.c.l.b16 %v117
  %v189 = vunpack.c.l.b16 %v118
  %v190 = vunpack.c.l.b16 %v119
  %v191 = vunpack.c.l.b16 %v120
  %v192 = vunpack.c.l.b16 %v121
  %v193 = vunpack.c.l.b16 %v122
  %v194 = vunpack.c.l.b16 %v123
  %v195 = vunpack.c.l.b16 %v124
  %v196 = vunpack.c.l.b16 %v125
  %v197 = vunpack.c.l.b16 %v126
  %v198 = vunpack.c.l.b16 %v127
  %v199 = vunpack.c.l.b16 %v128
  %v200 = vunpack.c.l.b16 %v129
  %v201 = vunpack.c.l.b16 %v130
  %v202 = vunpack.c.l.b16 %v131
  %v203 = vunpack.c.l.b16 %v132
  %v204 = vunpack.c.l.b16 %v133
  %v205 = vunpack.c.l.b16 %v134
  %v206 = vunpack.c.l.b16 %v135
  %v207 = vunpack.c.l.b16 %v136
  %v208 = vunpack.c.l.b16 %v137
  %v209 = vunpack.c.l.b16 %v138
  %v210 = vunpack.c.l.b16 %v139
  %v211 = vunpack.c.l.b16 %v140
  %v212 = vunpack.c.l.b16 %v141
  %v213 = vunpack.c.l.b16 %v142
  %v214 = vunpack.c.l.b16 %v143
  %v215 = vunpack.c.l.b16 %v144
  %v216 = vunpack.c.l.b16 %v145
  %v217 = vunpack.c.l.b16 %v146
  %v218 = vpack.c.b16 %v187, %v186
  %v219 = vpack.c.b16 %v189, %v188
  %v220 = vpack.c.b16 %v191, %v190
  %v221 = vpack.c.b16 %v193, %v192
  %v222 = vpack.c.b16 %v195, %v194
  %v223 = vpack.c.b16 %v197, %v196
  %v224 = vpack.c.b16 %v199, %v198
  %v225 = vpack.c.b16 %v201, %v200
  %v226 = vpack.c.b16 %v203, %v202
  %v227 = vpack.c.b16 %v205, %v204
  %v228 = vpack.c.b16 %v207, %v206
  %v229 = vpack.c.b16 %v209, %v208
  %v230 = vpack.c.b16 %v211, %v210
  %v231 = vpack.c.b16 %v213, %v212
  %v232 = vpack.c.b16 %v215, %v214
  %v233 = vpack.c.b16 %v217, %v216
  %250 = vmatprep.subr.bf16.mxu0 0
  %251 = vmatpush1.bf16.msra.mxu0 %v218
  %252 = vmatprep.subr.bf16.mxu0 0
  %253 = vmatpush1.bf16.msra.mxu0 %v219
  %254 = vmatprep.subr.bf16.mxu0 0
  %255 = vmatpush1.bf16.msra.mxu0 %v220
  %256 = vmatprep.subr.bf16.mxu0 0
  %257 = vmatpush1.bf16.msra.mxu0 %v221
  %258 = vmatprep.subr.bf16.mxu0 0
  %259 = vmatpush1.bf16.msra.mxu0 %v222
  %260 = vmatprep.subr.bf16.mxu0 0
  %261 = vmatpush1.bf16.msra.mxu0 %v223
  %262 = vmatprep.subr.bf16.mxu0 0
  %263 = vmatpush1.bf16.msra.mxu0 %v224
  %264 = vmatprep.subr.bf16.mxu0 0
  %265 = vmatpush1.bf16.msra.mxu0 %v225
  %266 = vmatprep.subr.bf16.mxu0 0
  %267 = vmatpush1.bf16.msra.mxu0 %v226
  %268 = vmatprep.subr.bf16.mxu0 0
  %269 = vmatpush1.bf16.msra.mxu0 %v227
  %270 = vmatprep.subr.bf16.mxu0 0
  %271 = vmatpush1.bf16.msra.mxu0 %v228
  %272 = vmatprep.subr.bf16.mxu0 0
  %273 = vmatpush1.bf16.msra.mxu0 %v229
  %274 = vmatprep.subr.bf16.mxu0 0
  %275 = vmatpush1.bf16.msra.mxu0 %v230
  %276 = vmatprep.subr.bf16.mxu0 0
  %277 = vmatpush1.bf16.msra.mxu0 %v231
  %278 = vmatprep.subr.bf16.mxu0 0
  %279 = vmatpush1.bf16.msra.mxu0 %v232
  %280 = vmatprep.subr.bf16.mxu0 0
  %281 = vmatpush1.bf16.msra.mxu0 %v233
  %282 = vmatprep.mubr.bf16.mxu0 %v114
  %283 = vmatmul.mubr.bf16.gmra.mrb[0].mxu0 %v113
  %v284 = vpop.f32.mrb[0].mxu0
  %v285 = vadd.f32 %v152, %v284
  %v286 = vpop.f32.mrb[0].mxu0
  %v287 = vpop.f32.mrb[0].mxu0
  %v288 = vpop.f32.mrb[0].mxu0
  %289 = vdwg.mxu0
  %v290 = vmax.f32 %v285, 0.0
  %v291 = vld [vmem:[%s5] sm:$0x1]
  %v293 = vlaneseq
  %v294 = vshrl.u32 %v293, 7
  %v295 = vsub.s32 0, %v294
  %v296 = vrot.slane %v291, %v295
  %v298 = vmul.f32 %v290, %v296
  %vm299 = vcmask 523264
  %v300 = vsel %vm299, %v298, 0.0
  %301 = vadd.xlane.f32.xlu0 %v300
  %v302 = vpop.xlane.xlu0 %301
  %v303 = vld [vmem:[#allocation2] sm:$0x1]
  %v305 = vlaneseq
  %v306 = vshrl.u32 %v305, 7
  %v307 = vsub.s32 0, %v306
  %v308 = vrot.slane %v303, %v307
  %v310 = vadd.f32 %v302, %v308
  %vm311 = vcmask 7168
  %312 = vst.msk [vmem:[%s7] sm:$0xff] %vm311, %v310
  // Predicated region
  $region30: #{tpu_custom_call.1} parent=0 // pred_check
    _
  $region31: #{tpu_custom_call.1} parent=0 // pred_check_branch
    %314 = sbr.rel (0) target = $region33
  $region32: #{tpu_custom_call.1} parent=0 // pred_region
    _
  $region33: #{tpu_custom_call.1} parent=0 // pred_fallthru
    _
  // Predicated region
  $region34: #{tpu_custom_call.1} parent=0 // pred_check
    _
  $region35: #{tpu_custom_call.1} parent=0 // pred_check_branch
    %316 = sbr.rel (0) target = $region37
  $region36: #{tpu_custom_call.1} parent=0 // pred_region
    _
  $region37: #{tpu_custom_call.1} parent=0 // pred_fallthru
    _

</llo_original>
